<compile_context>
chip_gen: v5e
topology: v5e:2x2
jax: 0.10.0
libtpu: 0.0.40
codegen_flags: <defaults>
</compile_context>

<pallas_src>
import functools

import jax
import jax.numpy as jnp
from jax.experimental import pallas as pl
from jax.experimental.pallas import tpu as pltpu

LN_EPS = 1e-5  # PyTorch nn.LayerNorm default


def _round_up(a, m):
    return (a + m - 1) // m * m


def _ctx_transformer_kernel(x_ref, w1_ref, b1_ref, gamma_ref, beta_ref,
                            w2_ref, b2_ref, o_ref, *, inv_d):
    # Padded shapes:
    #   x_ref     (TM, Cp) f32        w1_ref (Cp, Dp) bf16
    #   b1/gamma/beta (1, Dp) f32     w2_ref (Dp, Cp) bf16
    #   b2_ref    (1, Cp) f32         o_ref  (TM, Cp) f32
    x = x_ref[...].astype(jnp.bfloat16)

    # conv_1 (1x1)  ==  x @ W1^T + b1 ; bf16 operands, f32 MXU accumulation.
    h = jnp.dot(x, w1_ref[...], preferred_element_type=jnp.float32) + b1_ref[...]

    # LayerNorm over the (real) hidden dim D.  One-pass biased stats
    # (matches torch.nn.LayerNorm).  Lane reductions go to the XLU, rsqrt to
    # the EUP — both off the VALU critical path.
    s = jnp.sum(h, axis=-1, keepdims=True)
    s2 = jnp.sum(h * h, axis=-1, keepdims=True)
    mean = s * inv_d
    var = s2 * inv_d - mean * mean
    hn = (h - mean) * jax.lax.rsqrt(var + LN_EPS)
    hn = hn * gamma_ref[...] + beta_ref[...]

    # ReLU in f32 on the VPU; cast to bf16 only as the MXU operand.
    hr = jnp.maximum(hn, 0.0).astype(jnp.bfloat16)

    # conv_2 (1x1)  ==  hr @ W2^T + b2
    y = jnp.dot(hr, w2_ref[...], preferred_element_type=jnp.float32) + b2_ref[...]
    o_ref[...] = y.astype(o_ref.dtype)


def prepare_params(params, *, lane=128):
    """Pad channel/hidden dims to 128-lane multiples (zeros) and cast the two
    matmul weights to bf16.  Do this once, outside the per-step call."""
    C, D = params["w1"].shape
    Cp, Dp = _round_up(C, lane), _round_up(D, lane)

    def pad2(a, r, c):
        return jnp.pad(a, ((0, r - a.shape[0]), (0, c - a.shape[1])))

    return {
        "w1": pad2(params["w1"], Cp, Dp).astype(jnp.bfloat16),
        "b1": pad2(params["b1"], 1, Dp).astype(jnp.float32),
        "gamma": pad2(params["gamma"], 1, Dp).astype(jnp.float32),
        "beta": pad2(params["beta"], 1, Dp).astype(jnp.float32),
        "w2": pad2(params["w2"], Dp, Cp).astype(jnp.bfloat16),
        "b2": pad2(params["b2"], 1, Cp).astype(jnp.float32),
        "C": C, "D": D, "Cp": Cp, "Dp": Dp,
    }


def context_transformer(x_nchw, prepared, *, tm=None):
    """x_nchw: (N, C, 1, 1) float32. Returns (N, C, 1, 1) float32."""
    N, C, H, W = x_nchw.shape
    assert H == 1 and W == 1, (
        "LayerNorm(d_hidden) over the flattened conv_1 output requires H*W == 1")
    assert C == prepared["C"]
    Cp, Dp, D = prepared["Cp"], prepared["Dp"], prepared["D"]

    # Row tile: MXU-friendly 256 rows when the batch is big enough, otherwise
    # the smallest sublane-aligned tile covering N.
    if tm is None:
        tm = 256 if N >= 256 else _round_up(max(N, 8), 8)
    Np = _round_up(N, tm)
    grid = (Np // tm,)

    x2d = x_nchw.reshape(N, C).astype(jnp.float32)
    xp = jnp.pad(x2d, ((0, Np - N), (0, Cp - C)))

    kernel = functools.partial(_ctx_transformer_kernel, inv_d=1.0 / float(D))

    row_spec = pl.BlockSpec((tm, Cp), lambda i: (i, 0))   # activations: tiled over batch
    w1_spec = pl.BlockSpec((Cp, Dp), lambda i: (0, 0))    # weights: VMEM-resident
    vecD_spec = pl.BlockSpec((1, Dp), lambda i: (0, 0))
    w2_spec = pl.BlockSpec((Dp, Cp), lambda i: (0, 0))
    vecC_spec = pl.BlockSpec((1, Cp), lambda i: (0, 0))

    # VMEM budget: double-buffered activation tiles + resident bf16 weights
    # + f32 temporaries, with headroom.  Clamped to a safe range for v5e..v7x
    # (v7x scoped default is 32 MiB of 64 MiB physical).
    vmem_bytes = (4 * tm * Cp * 4            # x + out tiles, double-buffered, f32
                  + 2 * 2 * Cp * Dp * 2      # w1 + w2 (bf16), x2 slack
                  + 8 * Dp * 4 + 2 * Cp * 4  # bias / affine vectors
                  + 4 * tm * Dp * 4          # h / hn / hr temporaries
                  + (2 << 20))               # headroom
    vmem_bytes = int(min(max(vmem_bytes, 16 << 20), 48 << 20))

    cost = pl.CostEstimate(
        flops=4 * N * C * D,                       # two (N,C)x(C,D)-class matmuls
        transcendentals=N,                         # one rsqrt per row
        bytes_accessed=2 * N * C * 4 + 2 * C * D * 2 + (3 * D + C) * 4,
    )

    out = pl.pallas_call(
        kernel,
        out_shape=jax.ShapeDtypeStruct((Np, Cp), jnp.float32),
        grid=grid,
        in_specs=[row_spec, w1_spec, vecD_spec, vecD_spec, vecD_spec,
                  w2_spec, vecC_spec],
        out_specs=row_spec,
        compiler_params=pltpu.CompilerParams(
            dimension_semantics=("parallel",),
            vmem_limit_bytes=vmem_bytes),
        cost_estimate=cost,
    )(xp, prepared["w1"], prepared["b1"], prepared["gamma"], prepared["beta"],
      prepared["w2"], prepared["b2"])

    return out[:N, :C].reshape(N, C, 1, 1)


def make_params(key, channels, d_hidden):
    """Deterministic synthetic parameters (f32, natural shapes), mirroring the
    nn.Module: conv_1.weight (D,C,1,1), LayerNorm(D), conv_2.weight (C,D,1,1)."""
    k1, k2, k3, k4, k5, k6 = jax.random.split(key, 6)
    w1_t = jax.random.normal(k1, (d_hidden, channels), jnp.float32) * 0.1
    b1 = jax.random.normal(k2, (1, d_hidden), jnp.float32) * 0.1
    gamma = 1.0 + 0.1 * jax.random.normal(k3, (1, d_hidden), jnp.float32)
    beta = 0.1 * jax.random.normal(k4, (1, d_hidden), jnp.float32)
    w2_t = jax.random.normal(k5, (channels, d_hidden), jnp.float32) * 0.1
    b2 = jax.random.normal(k6, (1, channels), jnp.float32) * 0.1
    return {
        "w1": w1_t.T,    # (C, D)  -> x @ W1^T
        "b1": b1,
        "gamma": gamma,
        "beta": beta,
        "w2": w2_t.T,    # (D, C)  -> h @ W2^T
        "b2": b2,
    }


def reference_forward(x_nchw, params):
    """Pure-JAX f32 reference matching the PyTorch semantics."""
    N, C, _, _ = x_nchw.shape
    x = x_nchw.reshape(N, C).astype(jnp.float32)
    h = x @ params["w1"] + params["b1"]
    mean = jnp.mean(h, axis=-1, keepdims=True)
    var = jnp.mean((h - mean) ** 2, axis=-1, keepdims=True)
    hn = (h - mean) / jnp.sqrt(var + LN_EPS) * params["gamma"] + params["beta"]
    hr = jnp.maximum(hn, 0.0)
    y = hr @ params["w2"] + params["b2"]
    return y.reshape(N, C, 1, 1)


if __name__ == "__main__":
    batch, channels, d_hidden = 2, 4, 32
    key = jax.random.PRNGKey(0)
    kx, kp = jax.random.split(key)

    # GCNet's context transformer consumes the globally-pooled context: (N, C, 1, 1)
    x = jax.random.normal(kx, (batch, channels, 1, 1), jnp.float32)
    params = make_params(kp, channels, d_hidden)
    prepared = prepare_params(params)   # pad to 128 lanes, cast weights to bf16 (once)

    out = context_transformer(x, prepared)
    out = jax.block_until_ready(out)

    ref = reference_forward(x, params)
    assert out.shape == (batch, channels, 1, 1)
    # bf16 matmul weights (f32 accumulation) => loosened tolerance vs f32 reference.
    assert jnp.allclose(out, ref, atol=3e-2, rtol=3e-2), "mismatch vs reference"
    print("KERNEL_OK")
</pallas_src>

<mosaic_0001>
module attributes {stable_mosaic.version = 11 : i64} {
  func.func @_ctx_transformer_kernel(%arg0: i32, %arg1: memref<8x128xf32, #tpu.memory_space<vmem>>, %arg2: memref<128x128xbf16, #tpu.memory_space<vmem>>, %arg3: memref<1x128xf32, #tpu.memory_space<vmem>>, %arg4: memref<1x128xf32, #tpu.memory_space<vmem>>, %arg5: memref<1x128xf32, #tpu.memory_space<vmem>>, %arg6: memref<128x128xbf16, #tpu.memory_space<vmem>>, %arg7: memref<1x128xf32, #tpu.memory_space<vmem>>, %arg8: memref<8x128xf32, #tpu.memory_space<vmem>>) attributes {dimension_semantics = [#tpu.dimension_semantics<parallel>], iteration_bounds = array<i64: 1>, scalar_prefetch = 0 : i64, scratch_operands = 0 : i64, tpu.core_type = #tpu.core_type<tc>, window_params = [{transform_indices = @transform_0, window_bounds = array<i64: 8, 128>}, {pipeline_mode = #tpu.pipeline_mode<synchronous>, transform_indices = @transform_1, window_bounds = array<i64: 128, 128>}, {pipeline_mode = #tpu.pipeline_mode<synchronous>, transform_indices = @transform_2, window_bounds = array<i64: 1, 128>}, {pipeline_mode = #tpu.pipeline_mode<synchronous>, transform_indices = @transform_3, window_bounds = array<i64: 1, 128>}, {pipeline_mode = #tpu.pipeline_mode<synchronous>, transform_indices = @transform_4, window_bounds = array<i64: 1, 128>}, {pipeline_mode = #tpu.pipeline_mode<synchronous>, transform_indices = @transform_5, window_bounds = array<i64: 128, 128>}, {pipeline_mode = #tpu.pipeline_mode<synchronous>, transform_indices = @transform_6, window_bounds = array<i64: 1, 128>}, {transform_indices = @transform_7, window_bounds = array<i64: 8, 128>}]} {
    %c0 = arith.constant 0 : index
    %c0_0 = arith.constant 0 : index
    %0 = vector.load %arg1[%c0, %c0_0] : memref<8x128xf32, #tpu.memory_space<vmem>>, vector<8x128xf32>
    %1 = arith.truncf %0 : vector<8x128xf32> to vector<8x128xbf16>
    %c0_1 = arith.constant 0 : index
    %c0_2 = arith.constant 0 : index
    %2 = vector.load %arg2[%c0_1, %c0_2] : memref<128x128xbf16, #tpu.memory_space<vmem>>, vector<128x128xbf16>
    %cst = arith.constant dense<0.000000e+00> : vector<8x128xf32>
    %3 = tpu.matmul %1, %2, %cst {dimension_numbers = #tpu.dot_dimension_numbers<[1], [0], [0], [1], [0, 0, 1, 1], [], []>} : vector<8x128xbf16>, vector<128x128xbf16>, vector<8x128xf32> -> vector<8x128xf32>
    %c0_3 = arith.constant 0 : index
    %c0_4 = arith.constant 0 : index
    %4 = vector.load %arg3[%c0_3, %c0_4] : memref<1x128xf32, #tpu.memory_space<vmem>>, vector<1x128xf32>
    %5 = vector.broadcast %4 : vector<1x128xf32> to vector<8x128xf32>
    %6 = arith.addf %3, %5 : vector<8x128xf32>
    %cst_5 = arith.constant dense<0.000000e+00> : vector<8xf32>
    %7 = vector.multi_reduction <add>, %6, %cst_5 [1] : vector<8x128xf32> to vector<8xf32>
    %8 = vector.shape_cast %7 : vector<8xf32> to vector<8x1xf32>
    %9 = arith.mulf %6, %6 : vector<8x128xf32>
    %cst_6 = arith.constant dense<0.000000e+00> : vector<8xf32>
    %10 = vector.multi_reduction <add>, %9, %cst_6 [1] : vector<8x128xf32> to vector<8xf32>
    %11 = vector.shape_cast %10 : vector<8xf32> to vector<8x1xf32>
    %cst_7 = arith.constant 3.125000e-02 : f32
    %12 = vector.broadcast %cst_7 : f32 to vector<8x1xf32>
    %13 = arith.mulf %8, %12 : vector<8x1xf32>
    %cst_8 = arith.constant 3.125000e-02 : f32
    %14 = vector.broadcast %cst_8 : f32 to vector<8x1xf32>
    %15 = arith.mulf %11, %14 : vector<8x1xf32>
    %16 = arith.mulf %13, %13 : vector<8x1xf32>
    %17 = arith.subf %15, %16 : vector<8x1xf32>
    %18 = vector.broadcast %13 : vector<8x1xf32> to vector<8x128xf32>
    %19 = arith.subf %6, %18 : vector<8x128xf32>
    %cst_9 = arith.constant 9.99999974E-6 : f32
    %20 = vector.broadcast %cst_9 : f32 to vector<8x1xf32>
    %21 = arith.addf %17, %20 : vector<8x1xf32>
    %22 = math.rsqrt %21 : vector<8x1xf32>
    %23 = vector.broadcast %22 : vector<8x1xf32> to vector<8x128xf32>
    %24 = arith.mulf %19, %23 : vector<8x128xf32>
    %c0_10 = arith.constant 0 : index
    %c0_11 = arith.constant 0 : index
    %25 = vector.load %arg4[%c0_10, %c0_11] : memref<1x128xf32, #tpu.memory_space<vmem>>, vector<1x128xf32>
    %26 = vector.broadcast %25 : vector<1x128xf32> to vector<8x128xf32>
    %27 = arith.mulf %24, %26 : vector<8x128xf32>
    %c0_12 = arith.constant 0 : index
    %c0_13 = arith.constant 0 : index
    %28 = vector.load %arg5[%c0_12, %c0_13] : memref<1x128xf32, #tpu.memory_space<vmem>>, vector<1x128xf32>
    %29 = vector.broadcast %28 : vector<1x128xf32> to vector<8x128xf32>
    %30 = arith.addf %27, %29 : vector<8x128xf32>
    %cst_14 = arith.constant 0.000000e+00 : f32
    %31 = vector.broadcast %cst_14 : f32 to vector<8x128xf32>
    %32 = arith.maximumf %30, %31 : vector<8x128xf32>
    %33 = arith.truncf %32 : vector<8x128xf32> to vector<8x128xbf16>
    %c0_15 = arith.constant 0 : index
    %c0_16 = arith.constant 0 : index
    %34 = vector.load %arg6[%c0_15, %c0_16] : memref<128x128xbf16, #tpu.memory_space<vmem>>, vector<128x128xbf16>
    %cst_17 = arith.constant dense<0.000000e+00> : vector<8x128xf32>
    %35 = tpu.matmul %33, %34, %cst_17 {dimension_numbers = #tpu.dot_dimension_numbers<[1], [0], [0], [1], [0, 0, 1, 1], [], []>} : vector<8x128xbf16>, vector<128x128xbf16>, vector<8x128xf32> -> vector<8x128xf32>
    %c0_18 = arith.constant 0 : index
    %c0_19 = arith.constant 0 : index
    %36 = vector.load %arg7[%c0_18, %c0_19] : memref<1x128xf32, #tpu.memory_space<vmem>>, vector<1x128xf32>
    %37 = vector.broadcast %36 : vector<1x128xf32> to vector<8x128xf32>
    %38 = arith.addf %35, %37 : vector<8x128xf32>
    %c0_20 = arith.constant 0 : index
    %c0_21 = arith.constant 0 : index
    %39 = vector.load %arg8[%c0_20, %c0_21] : memref<8x128xf32, #tpu.memory_space<vmem>>, vector<8x128xf32>
    tpu.vector_store %arg8[%c0_20, %c0_21], %38 {strides = array<i32>} : memref<8x128xf32, #tpu.memory_space<vmem>>, vector<8x128xf32>,
    return
  }
  func.func @transform_0(%arg0: i32) -> (i32, i32) {
    %c0_i32 = arith.constant 0 : i32
    %c0_i32_0 = arith.constant 0 : i32
    return %arg0, %c0_i32 : i32, i32
  }
  func.func @transform_1(%arg0: i32) -> (i32, i32) {
    %c0_i32 = arith.constant 0 : i32
    %c0_i32_0 = arith.constant 0 : i32
    %c0_i32_1 = arith.constant 0 : i32
    return %c0_i32, %c0_i32_0 : i32, i32
  }
  func.func @transform_2(%arg0: i32) -> (i32, i32) {
    %c0_i32 = arith.constant 0 : i32
    %c0_i32_0 = arith.constant 0 : i32
    %c0_i32_1 = arith.constant 0 : i32
    return %c0_i32, %c0_i32_0 : i32, i32
  }
  func.func @transform_3(%arg0: i32) -> (i32, i32) {
    %c0_i32 = arith.constant 0 : i32
    %c0_i32_0 = arith.constant 0 : i32
    %c0_i32_1 = arith.constant 0 : i32
    return %c0_i32, %c0_i32_0 : i32, i32
  }
  func.func @transform_4(%arg0: i32) -> (i32, i32) {
    %c0_i32 = arith.constant 0 : i32
    %c0_i32_0 = arith.constant 0 : i32
    %c0_i32_1 = arith.constant 0 : i32
    return %c0_i32, %c0_i32_0 : i32, i32
  }
  func.func @transform_5(%arg0: i32) -> (i32, i32) {
    %c0_i32 = arith.constant 0 : i32
    %c0_i32_0 = arith.constant 0 : i32
    %c0_i32_1 = arith.constant 0 : i32
    return %c0_i32, %c0_i32_0 : i32, i32
  }
  func.func @transform_6(%arg0: i32) -> (i32, i32) {
    %c0_i32 = arith.constant 0 : i32
    %c0_i32_0 = arith.constant 0 : i32
    %c0_i32_1 = arith.constant 0 : i32
    return %c0_i32, %c0_i32_0 : i32, i32
  }
  func.func @transform_7(%arg0: i32) -> (i32, i32) {
    %c0_i32 = arith.constant 0 : i32
    %c0_i32_0 = arith.constant 0 : i32
    return %arg0, %c0_i32 : i32, i32
  }
}

</mosaic_0001>

<llo_original>
// kernel: tpu_custom_call.1
$region0: #{tpu_custom_call.1}
  #allocation0 [shape = 'u32[]', space=smem, size = 0x4, offset = 0x4, fixed_abs, tag = 'smem constant byte address 0x4 - core index']
  #allocation1 [shape = 'u32[72,128]{1,0:T(1,128)}', space=vmem, size = 0x9000, scoped, tag = 'internal scratch']
  %s0 = inlined_call_operand.hbm [shape: f32[8,128], index: 0, kind: input, shape index: {}]
  %s1 = inlined_call_operand.hbm [shape: bf16[128,128], index: 1, kind: input, shape index: {}]
  %s2 = inlined_call_operand.vmem [shape: f32[1,128], index: 2, kind: input, shape index: {}]
  %s3 = inlined_call_operand.vmem [shape: f32[1,128], index: 3, kind: input, shape index: {}]
  %s4 = inlined_call_operand.vmem [shape: f32[1,128], index: 4, kind: input, shape index: {}]
  %s5 = inlined_call_operand.hbm [shape: bf16[128,128], index: 5, kind: input, shape index: {}]
  %s6 = inlined_call_operand.vmem [shape: f32[1,128], index: 6, kind: input, shape index: {}]
  %s7 = inlined_call_operand.hbm [shape: f32[8,128], index: 7, kind: output, shape index: {}]
  %s8 = sld [smem:[#allocation0]]
  $region50: #{tpu_custom_call.1} parent=0
    _
  %s10 = ssub.s32 1, %s8
  %s11 = scalar_select 0, %s10, %s8
  $region1: #{tpu_custom_call.1} parent=0
    #allocation2 [shape = 'u8[4096]{0}', space=vmem, size = 0x1000, scoped, tag = 'input window, operand 0, single buffered']
    #allocation3 [shape = 's32[1]{0}', space=sflag, size = 0x4, scoped, tag = 'scoped memory for tpu_custom_call.1']
    #allocation4 [shape = 's32[1]{0}', space=sflag, size = 0x4, scoped, tag = 'scoped memory for tpu_custom_call.1']
    #allocation5 [shape = 'u8[32768]{0}', space=vmem, size = 0x8000, scoped, tag = 'input window, operand 1, single buffered']
    #allocation6 [shape = 's32[1]{0}', space=sflag, size = 0x4, scoped, tag = 'scoped memory for tpu_custom_call.1']
    #allocation7 [shape = 'u8[32768]{0}', space=vmem, size = 0x8000, scoped, tag = 'input window, operand 5, single buffered']
    #allocation8 [shape = 'u8[4096]{0}', space=vmem, size = 0x1000, scoped, tag = 'output window, operand 0, single buffered']
    %12 = vsyncpa [#allocation3], 0
    %13 = vsyncpa [#allocation6], 0
    %14 = vsyncpa [#allocation4], 0
    // Predicated region
    $region2: #{tpu_custom_call.1} parent=1 // pred_check
      _
    $region3: #{tpu_custom_call.1} parent=1 // pred_check_branch
      %16 = sbr.rel (0) target = $region5
    $region4: #{tpu_custom_call.1} parent=1 // pred_region
      %18 = vsyncadd [#allocation3], 0
      %s20 = sshll.u32 %s0, 4
      %s21 = int_to_ptr.hbm [resolvable:$true] %s20
      %s22 = sshll.u32 [#allocation2], 4
      %s23 = int_to_ptr.vmem [resolvable:$true] %s22
      %25 = dma.hbm_to_vmem [thread:$0]  %s21, 128, %s23, [#allocation3]
    $region5: #{tpu_custom_call.1} parent=1 // pred_fallthru
      _
    // Predicated region
    $region6: #{tpu_custom_call.1} parent=1 // pred_check
      _
    $region7: #{tpu_custom_call.1} parent=1 // pred_check_branch
      %27 = sbr.rel (0) target = $region9
    $region8: #{tpu_custom_call.1} parent=1 // pred_region
      %29 = vsyncadd [#allocation6], 0
      %s30 = sshll.u32 %s1, 4
      %s31 = int_to_ptr.hbm [resolvable:$true] %s30
      %s32 = sshll.u32 [#allocation5], 4
      %s33 = int_to_ptr.vmem [resolvable:$true] %s32
      %38 = dma.hbm_to_vmem [thread:$0]  %s31, 1024, %s33, [#allocation6], 64, 64, 4
    $region9: #{tpu_custom_call.1} parent=1 // pred_fallthru
      _
    // Predicated region
    $region10: #{tpu_custom_call.1} parent=1 // pred_check
      _
    $region11: #{tpu_custom_call.1} parent=1 // pred_check_branch
      %40 = sbr.rel (0) target = $region13
    $region12: #{tpu_custom_call.1} parent=1 // pred_region
      _
    $region13: #{tpu_custom_call.1} parent=1 // pred_fallthru
      _
    // Predicated region
    $region14: #{tpu_custom_call.1} parent=1 // pred_check
      _
    $region15: #{tpu_custom_call.1} parent=1 // pred_check_branch
      %42 = sbr.rel (0) target = $region17
    $region16: #{tpu_custom_call.1} parent=1 // pred_region
      _
    $region17: #{tpu_custom_call.1} parent=1 // pred_fallthru
      _
    // Predicated region
    $region18: #{tpu_custom_call.1} parent=1 // pred_check
      _
    $region19: #{tpu_custom_call.1} parent=1 // pred_check_branch
      %44 = sbr.rel (0) target = $region21
    $region20: #{tpu_custom_call.1} parent=1 // pred_region
      _
    $region21: #{tpu_custom_call.1} parent=1 // pred_fallthru
      _
    // Predicated region
    $region22: #{tpu_custom_call.1} parent=1 // pred_check
      _
    $region23: #{tpu_custom_call.1} parent=1 // pred_check_branch
      %46 = sbr.rel (0) target = $region25
    $region24: #{tpu_custom_call.1} parent=1 // pred_region
      %48 = vsyncadd [#allocation6], 0
      %s49 = sshll.u32 %s5, 4
      %s50 = int_to_ptr.hbm [resolvable:$true] %s49
      %s51 = sshll.u32 [#allocation7], 4
      %s52 = int_to_ptr.vmem [resolvable:$true] %s51
      %57 = dma.hbm_to_vmem [thread:$0]  %s50, 1024, %s52, [#allocation6], 64, 64, 4
    $region25: #{tpu_custom_call.1} parent=1 // pred_fallthru
      _
    // Predicated region
    $region26: #{tpu_custom_call.1} parent=1 // pred_check
      _
    $region27: #{tpu_custom_call.1} parent=1 // pred_check_branch
      %59 = sbr.rel (0) target = $region29
    $region28: #{tpu_custom_call.1} parent=1 // pred_region
      _
    $region29: #{tpu_custom_call.1} parent=1 // pred_fallthru
      _
    // Predicated region
    $region30: #{tpu_custom_call.1} parent=1 // pred_check
      _
    $region31: #{tpu_custom_call.1} parent=1 // pred_check_branch
      %61 = sbr.rel (0) target = $region33
    $region32: #{tpu_custom_call.1} parent=1 // pred_region
      %63 = dma.done [#allocation3], 128
    $region33: #{tpu_custom_call.1} parent=1 // pred_fallthru
      _
    // Predicated region
    $region34: #{tpu_custom_call.1} parent=1 // pred_check
      _
    $region35: #{tpu_custom_call.1} parent=1 // pred_check_branch
      %65 = sbr.rel (0) target = $region37
    $region36: #{tpu_custom_call.1} parent=1 // pred_region
      %67 = dma.done [#allocation6], 1024
    $region37: #{tpu_custom_call.1} parent=1 // pred_fallthru
      _
    // Predicated region
    $region38: #{tpu_custom_call.1} parent=1 // pred_check
      _
    $region39: #{tpu_custom_call.1} parent=1 // pred_check_branch
      %69 = sbr.rel (0) target = $region41
    $region40: #{tpu_custom_call.1} parent=1 // pred_region
      %71 = dma.done [#allocation6], 1024
    $region41: #{tpu_custom_call.1} parent=1 // pred_fallthru
      _
    %v72 = vld [vmem:[#allocation2] sm:$0xff]
    %v73 = vpack.c.bf16 %v72, %v72
    %v74 = vld [vmem:[#allocation5] sm:$0xf]
    %v75 = vld [vmem:[#allocation5 + $0x4] sm:$0xf]
    %v76 = vld [vmem:[#allocation5 + $0x8] sm:$0xf]
    %v77 = vld [vmem:[#allocation5 + $0xc] sm:$0xf]
    %v78 = vld [vmem:[#allocation5 + $0x10] sm:$0xf]
    %v79 = vld [vmem:[#allocation5 + $0x14] sm:$0xf]
    %v80 = vld [vmem:[#allocation5 + $0x18] sm:$0xf]
    %v81 = vld [vmem:[#allocation5 + $0x1c] sm:$0xf]
    %v82 = vld [vmem:[#allocation5 + $0x20] sm:$0xf]
    %v83 = vld [vmem:[#allocation5 + $0x24] sm:$0xf]
    %v84 = vld [vmem:[#allocation5 + $0x28] sm:$0xf]
    %v85 = vld [vmem:[#allocation5 + $0x2c] sm:$0xf]
    %v86 = vld [vmem:[#allocation5 + $0x30] sm:$0xf]
    %v87 = vld [vmem:[#allocation5 + $0x34] sm:$0xf]
    %v88 = vld [vmem:[#allocation5 + $0x38] sm:$0xf]
    %v89 = vld [vmem:[#allocation5 + $0x3c] sm:$0xf]
    %v90 = vld [vmem:[%s2] sm:$0x1]
    %v92 = vperm.slane %v90, 0
    %v110 = vunpack.c.l.b16 %v74
    %v111 = vunpack.c.l.b16 %v75
    %v112 = vunpack.c.l.b16 %v76
    %v113 = vunpack.c.l.b16 %v77
    %v114 = vunpack.c.l.b16 %v78
    %v115 = vunpack.c.l.b16 %v79
    %v116 = vunpack.c.l.b16 %v80
    %v117 = vunpack.c.l.b16 %v81
    %v118 = vunpack.c.l.b16 %v82
    %v119 = vunpack.c.l.b16 %v83
    %v120 = vunpack.c.l.b16 %v84
    %v121 = vunpack.c.l.b16 %v85
    %v122 = vunpack.c.l.b16 %v86
    %v123 = vunpack.c.l.b16 %v87
    %v124 = vunpack.c.l.b16 %v88
    %v125 = vunpack.c.l.b16 %v89
    %v126 = vpack.c.b16 %v111, %v110
    %v127 = vpack.c.b16 %v113, %v112
    %v128 = vpack.c.b16 %v115, %v114
    %v129 = vpack.c.b16 %v117, %v116
    %v130 = vpack.c.b16 %v119, %v118
    %v131 = vpack.c.b16 %v121, %v120
    %v132 = vpack.c.b16 %v123, %v122
    %v133 = vpack.c.b16 %v125, %v124
    %142 = vmatpush.bf16.msra.mxu0 %v133
    %143 = vmatpush.bf16.msra.mxu0 %v132
    %144 = vmatpush.bf16.msra.mxu0 %v131
    %145 = vmatpush.bf16.msra.mxu0 %v130
    %146 = vmatpush.bf16.msra.mxu0 %v129
    %147 = vmatpush.bf16.msra.mxu0 %v128
    %148 = vmatpush.bf16.msra.mxu0 %v127
    %149 = vmatpush.bf16.msra.mxu0 %v126
    %150 = vmatmul.bf16.gmra.mxu0 %v73
    %v151 = vpop.f32.mrf.mxu0
    %v152 = vadd.f32 %v92, %v151
    %v153 = vpop.f32.mrf.mxu0
    %154 = vdwg.mxu0
    %155 = vadd.xlane.f32.xlu0 %v152
    %v156 = vpop.xlane.xlu0 %155
    %v157 = vmul.f32 %v152, %v152
    %158 = vadd.xlane.f32.xlu0 %v157
    %v159 = vpop.xlane.xlu0 %158
    %v160 = vmul.f32 %v156, 0.03125
    %v161 = vmul.f32 %v159, 0.03125
    %v162 = vmul.f32 %v160, %v160
    %v163 = vsub.f32 %v161, %v162
    %v164 = vsub.f32 %v152, %v160
    %v165 = vadd.f32 %v163, 1e-05
    %v166 = vrsqrt.pop %v165
    %v167 = vmul.f32 %v166, %v165
    %v168 = vmul.f32 %v167, %v166
    %v169 = vmul.f32 0.5, %v168
    %v170 = vsub.f32 1.5, %v169
    %v171 = vmul.f32 %v166, %v170
    %vm172 = vweird.f32 %v165
    %vm173 = vweird.f32 %v166
    %vm174 = vmor %vm172, %vm173
    %v175 = vsel %vm174, %v166, %v171
    %v176 = vmul.f32 %v164, %v175
    %v177 = vld [vmem:[%s3] sm:$0x1]
    %v179 = vperm.slane %v177, 0
    %v181 = vmul.f32 %v176, %v179
    %v182 = vld [vmem:[%s4] sm:$0x1]
    %v184 = vperm.slane %v182, 0
    %v186 = vadd.f32 %v181, %v184
    %v187 = vmax.f32 %v186, 0.0
    %v188 = vpack.c.bf16 %v187, %v187
    %v189 = vld [vmem:[#allocation7] sm:$0xf]
    %v190 = vld [vmem:[#allocation7 + $0x4] sm:$0xf]
    %v191 = vld [vmem:[#allocation7 + $0x8] sm:$0xf]
    %v192 = vld [vmem:[#allocation7 + $0xc] sm:$0xf]
    %v193 = vld [vmem:[#allocation7 + $0x10] sm:$0xf]
    %v194 = vld [vmem:[#allocation7 + $0x14] sm:$0xf]
    %v195 = vld [vmem:[#allocation7 + $0x18] sm:$0xf]
    %v196 = vld [vmem:[#allocation7 + $0x1c] sm:$0xf]
    %v197 = vld [vmem:[#allocation7 + $0x20] sm:$0xf]
    %v198 = vld [vmem:[#allocation7 + $0x24] sm:$0xf]
    %v199 = vld [vmem:[#allocation7 + $0x28] sm:$0xf]
    %v200 = vld [vmem:[#allocation7 + $0x2c] sm:$0xf]
    %v201 = vld [vmem:[#allocation7 + $0x30] sm:$0xf]
    %v202 = vld [vmem:[#allocation7 + $0x34] sm:$0xf]
    %v203 = vld [vmem:[#allocation7 + $0x38] sm:$0xf]
    %v204 = vld [vmem:[#allocation7 + $0x3c] sm:$0xf]
    %v205 = vld [vmem:[%s6] sm:$0x1]
    %v207 = vperm.slane %v205, 0
    %v225 = vunpack.c.l.b16 %v189
    %v226 = vunpack.c.l.b16 %v190
    %v227 = vunpack.c.l.b16 %v191
    %v228 = vunpack.c.l.b16 %v192
    %v229 = vunpack.c.l.b16 %v193
    %v230 = vunpack.c.l.b16 %v194
    %v231 = vunpack.c.l.b16 %v195
    %v232 = vunpack.c.l.b16 %v196
    %v233 = vunpack.c.l.b16 %v197
    %v234 = vunpack.c.l.b16 %v198
    %v235 = vunpack.c.l.b16 %v199
    %v236 = vunpack.c.l.b16 %v200
    %v237 = vunpack.c.l.b16 %v201
    %v238 = vunpack.c.l.b16 %v202
    %v239 = vunpack.c.l.b16 %v203
    %v240 = vunpack.c.l.b16 %v204
    %v241 = vpack.c.b16 %v226, %v225
    %v242 = vpack.c.b16 %v228, %v227
    %v243 = vpack.c.b16 %v230, %v229
    %v244 = vpack.c.b16 %v232, %v231
    %v245 = vpack.c.b16 %v234, %v233
    %v246 = vpack.c.b16 %v236, %v235
    %v247 = vpack.c.b16 %v238, %v237
    %v248 = vpack.c.b16 %v240, %v239
    %257 = vmatpush.bf16.msra.mxu0 %v248
    %258 = vmatpush.bf16.msra.mxu0 %v247
    %259 = vmatpush.bf16.msra.mxu0 %v246
    %260 = vmatpush.bf16.msra.mxu0 %v245
    %261 = vmatpush.bf16.msra.mxu0 %v244
    %262 = vmatpush.bf16.msra.mxu0 %v243
    %263 = vmatpush.bf16.msra.mxu0 %v242
    %264 = vmatpush.bf16.msra.mxu0 %v241
    %265 = vmatmul.bf16.gmra.mxu0 %v188
    %v266 = vpop.f32.mrf.mxu0
    %v267 = vadd.f32 %v207, %v266
    %v268 = vpop.f32.mrf.mxu0
    %269 = vdwg.mxu0
    %270 = vst [vmem:[#allocation8] sm:$0xff] %v267
    // Predicated region
    $region42: #{tpu_custom_call.1} parent=1 // pred_check
      _
    $region43: #{tpu_custom_call.1} parent=1 // pred_check_branch
      %272 = sbr.rel (0) target = $region45
    $region44: #{tpu_custom_call.1} parent=1 // pred_region
      %274 = vsyncadd [#allocation4], 0
      %s276 = sshll.u32 [#allocation8], 4
      %s277 = int_to_ptr.vmem [resolvable:$true] %s276
      %s278 = sshll.u32 %s7, 4
      %s279 = int_to_ptr.hbm [resolvable:$true] %s278
      %281 = dma.vmem_to_hbm [thread:$0]  %s277, 128, %s279, [#allocation4]
    $region45: #{tpu_custom_call.1} parent=1 // pred_fallthru
      _
    // Predicated region
    $region46: #{tpu_custom_call.1} parent=1 // pred_check
      _
    $region47: #{tpu_custom_call.1} parent=1 // pred_check_branch
      %283 = sbr.rel (0) target = $region49
    $region48: #{tpu_custom_call.1} parent=1 // pred_region
      %285 = dma.done [#allocation4], 128
    $region49: #{tpu_custom_call.1} parent=1 // pred_fallthru
      _
    %286 = vsyncpa [#allocation3], 1
    %287 = vsyncpa [#allocation6], 1
    %288 = vsyncpa [#allocation4], 1

</llo_original>
